<compile_context>
chip_gen: v5e
topology: v5e:2x2
jax: 0.10.0
libtpu: 0.0.40
codegen_flags: <defaults>
</compile_context>

<pallas_src>
import jax
import jax.numpy as jnp
from jax.experimental import pallas as pl
from jax.experimental.pallas import tpu as pltpu

NUM_CLASSES = 24
BN_EPS = 1e-5
D_IN = 63          # raw landmark features (kept un-padded; 63 is the full minor dim)
D_OUT_PAD = 128    # lane-dense padded classifier width (logits live in cols [:24])
H1, H2, H3 = 128, 256, 128


def _round_up(n, m):
    return (n + m - 1) // m * m


# ---------------------------------------------------------------------------
# Kernel
# ---------------------------------------------------------------------------
def handsign_kernel(x_ref,
                    w1_ref, b1_ref,
                    w2_ref, b2_ref,
                    w3_ref, b3_ref,
                    w4_ref, b4_ref,
                    o_ref):
    # x tile: (TB, 63) f32 straight from HBM; cast to bf16 here so every matmul
    # runs on the MXU with f32 accumulation (K=63 is padded internally by Mosaic).
    x = x_ref[...].astype(jnp.bfloat16)
    h = jnp.dot(x, w1_ref[...], preferred_element_type=jnp.float32) + b1_ref[...]
    h = jnp.maximum(h, 0.0)
    h = jnp.dot(h.astype(jnp.bfloat16), w2_ref[...],
                preferred_element_type=jnp.float32) + b2_ref[...]
    h = jnp.maximum(h, 0.0)
    h = jnp.dot(h.astype(jnp.bfloat16), w3_ref[...],
                preferred_element_type=jnp.float32) + b3_ref[...]
    h = jnp.maximum(h, 0.0)
    out = jnp.dot(h.astype(jnp.bfloat16), w4_ref[...],
                  preferred_element_type=jnp.float32) + b4_ref[...]
    # bf16 output tile: lane-dense unmasked stores, half the f32 writeback bytes.
    o_ref[...] = out.astype(o_ref.dtype)


# ---------------------------------------------------------------------------
# Parameter preparation (BN folding in f32 + padding + final bf16 cast)
# ---------------------------------------------------------------------------
def prepare_params(params):
    """Fold eval-mode BatchNorm (Linear->ReLU->BN ordering, as in the PyTorch module)
    into the FOLLOWING Linear; pad classifier output to a lane-dense width.

    The fold is done entirely in f32; weights are cast to bf16 only at the end
    (so a small running_var only affects the final rounding, not intermediate math).

    Input : 20 raw f32 arrays (PyTorch HandSignNet layout, W stored as [F_in, F_out]).
    Output: 8 arrays (w1,b1,w2,b2,w3,b3,w4,b4); weights bf16, biases f32 of shape (1, F).
    """
    (w1, b1, g1, be1, m1, v1,
     w2, b2, g2, be2, m2, v2,
     w3, b3, g3, be3, m3, v3,
     w4, b4) = list(params)

    def bn_scale_shift(g, be, m, v):
        s = g * jax.lax.rsqrt(v + BN_EPS)      # (1, F)
        t = be - s * m                         # (1, F)
        return s, t

    s1, t1 = bn_scale_shift(g1, be1, m1, v1)
    s2, t2 = bn_scale_shift(g2, be2, m2, v2)
    s3, t3 = bn_scale_shift(g3, be3, m3, v3)

    # (h*s + t) @ W + b  ==  h @ (s.T * W) + (t @ W + b)
    w2f = s1.reshape(-1, 1) * w2
    b2f = t1 @ w2 + b2
    w3f = s2.reshape(-1, 1) * w3
    b3f = t2 @ w3 + b3
    w4f = s3.reshape(-1, 1) * w4
    b4f = t3 @ w4 + b4

    # Pad classifier output 24 -> 128 for lane-dense stores (zero columns).
    w4p = jnp.zeros((H3, D_OUT_PAD), jnp.float32).at[:, :NUM_CLASSES].set(w4f)
    b4p = jnp.zeros((1, D_OUT_PAD), jnp.float32).at[:, :NUM_CLASSES].set(b4f)

    bf16 = lambda w: w.astype(jnp.bfloat16)
    return [bf16(w1), b1,
            bf16(w2f), b2f,
            bf16(w3f), b3f,
            bf16(w4p), b4p]


# ---------------------------------------------------------------------------
# Wrapper
# ---------------------------------------------------------------------------
def hand_sign_net_pallas(x, prepared, *, tb=2048):
    """x: [B, 63] float32; prepared: output of prepare_params(). Returns [B, 24] f32."""
    B = x.shape[0]

    # Tile selection:
    #  - tiny batches (B <= 32): one tile, rounded to 16 rows.
    #  - otherwise: at least 2 balanced tiles (v7x megacore sharding of the
    #    "parallel" grid axis), each at most ~tb rows, rounded to 16 rows.
    B16 = _round_up(max(B, 1), 16)
    if B16 <= 32:
        TB = B16
    else:
        n_tiles = max(2, pl.cdiv(B16, tb))
        TB = _round_up(pl.cdiv(B16, n_tiles), 16)
    B_pad = _round_up(B, TB)

    # Only the batch dim is padded, and only when needed (no feature pad / cast
    # pre-pass over the activations).
    x_p = x if B_pad == B else jnp.pad(x, ((0, B_pad - B), (0, 0)))

    w1, b1, w2, b2, w3, b3, w4, b4 = prepared
    const = lambda i: (0, 0)      # weights/biases resident across batch tiles

    flops = 2 * B_pad * (D_IN * H1 + H1 * H2 + H2 * H3 + H3 * D_OUT_PAD)
    bytes_accessed = (x_p.size * x_p.dtype.itemsize
                      + sum(a.size * a.dtype.itemsize for a in prepared)
                      + B_pad * D_OUT_PAD * 2)

    out = pl.pallas_call(
        handsign_kernel,
        out_shape=jax.ShapeDtypeStruct((B_pad, D_OUT_PAD), jnp.bfloat16),
        grid_spec=pltpu.PrefetchScalarGridSpec(
            num_scalar_prefetch=0,
            grid=(B_pad // TB,),
            in_specs=[
                pl.BlockSpec((TB, D_IN), lambda i: (i, 0)),
                pl.BlockSpec((D_IN, H1), const), pl.BlockSpec((1, H1), const),
                pl.BlockSpec((H1, H2), const),   pl.BlockSpec((1, H2), const),
                pl.BlockSpec((H2, H3), const),   pl.BlockSpec((1, H3), const),
                pl.BlockSpec((H3, D_OUT_PAD), const), pl.BlockSpec((1, D_OUT_PAD), const),
            ],
            out_specs=pl.BlockSpec((TB, D_OUT_PAD), lambda i: (i, 0)),
        ),
        compiler_params=pltpu.CompilerParams(
            dimension_semantics=("parallel",),      # v7x: batch tiles across 2 TCs
            vmem_limit_bytes=32 * 1024 * 1024),     # headroom over v5e's 16 MiB default
        cost_estimate=pl.CostEstimate(
            flops=flops, transcendentals=0, bytes_accessed=bytes_accessed),
    )(x_p, w1, b1, w2, b2, w3, b3, w4, b4)

    return out[:B, :NUM_CLASSES].astype(jnp.float32)


# ---------------------------------------------------------------------------
# Synthetic parameters + references
# ---------------------------------------------------------------------------
def make_params(key):
    """Deterministic synthetic parameters matching HandSignNet.__init__ shapes."""
    dims = [(63, 128), (128, 256), (256, 128)]
    params = []
    keys = jax.random.split(key, 16)
    ki = 0
    for (fin, fout) in dims:
        w = jax.random.normal(keys[ki], (fin, fout), jnp.float32) * (1.0 / jnp.sqrt(fin)); ki += 1
        b = jax.random.normal(keys[ki], (1, fout), jnp.float32) * 0.05; ki += 1
        gamma = 1.0 + 0.1 * jax.random.normal(keys[ki], (1, fout), jnp.float32); ki += 1
        beta = 0.05 * jax.random.normal(keys[ki], (1, fout), jnp.float32); ki += 1
        run_mean = 0.1 * jnp.arange(fout, dtype=jnp.float32).reshape(1, fout) / fout
        run_var = 1.0 + 0.01 * jnp.arange(fout, dtype=jnp.float32).reshape(1, fout) / fout
        params += [w, b, gamma, beta, run_mean, run_var]
    w4 = jax.random.normal(keys[ki], (128, NUM_CLASSES), jnp.float32) * (1.0 / jnp.sqrt(128.0)); ki += 1
    b4 = jax.random.normal(keys[ki], (1, NUM_CLASSES), jnp.float32) * 0.05; ki += 1
    params += [w4, b4]
    return params


def reference_forward(x, params):
    """Pure-JAX f32 reference (eval-mode PyTorch semantics: Linear->ReLU->BN->Dropout)."""
    p = list(params)
    h = x
    for i in range(3):
        w, b, g, be, m, v = p[i * 6: i * 6 + 6]
        h = jnp.maximum(h @ w + b, 0.0)
        h = g * (h - m) * jax.lax.rsqrt(v + BN_EPS) + be
    w4, b4 = p[18], p[19]
    return h @ w4 + b4


def matched_reference(x, prepared):
    """Pure-JAX reference mirroring the kernel's bf16/f32 numerics exactly."""
    w1, b1, w2, b2, w3, b3, w4, b4 = prepared
    h = x.astype(jnp.bfloat16)
    h = jnp.maximum(jnp.dot(h, w1, preferred_element_type=jnp.float32) + b1, 0.0)
    h = jnp.maximum(jnp.dot(h.astype(jnp.bfloat16), w2,
                            preferred_element_type=jnp.float32) + b2, 0.0)
    h = jnp.maximum(jnp.dot(h.astype(jnp.bfloat16), w3,
                            preferred_element_type=jnp.float32) + b3, 0.0)
    out = jnp.dot(h.astype(jnp.bfloat16), w4,
                  preferred_element_type=jnp.float32) + b4
    return out.astype(jnp.bfloat16).astype(jnp.float32)[:, :NUM_CLASSES]


if __name__ == "__main__":
    key = jax.random.PRNGKey(0)
    kx, kp = jax.random.split(key)

    params = make_params(kp)
    prepared = prepare_params(params)

    # Small, single-tile latency path.
    B = 8
    x = jax.random.normal(kx, (B, D_IN), jnp.float32)
    out = jax.block_until_ready(hand_sign_net_pallas(x, prepared))
    assert out.shape == (B, NUM_CLASSES)

    # Tight check vs a reference with identical bf16/f32 numerics.
    ref_bf16 = matched_reference(x, prepared)
    assert jnp.allclose(out, ref_bf16, atol=2e-2, rtol=2e-2), "mismatch vs matched bf16 reference"

    # Semantic check vs pure-f32 eval-mode PyTorch math (tolerance for bf16 MXU operands).
    ref_f32 = reference_forward(x, params)
    assert jnp.allclose(out, ref_f32, atol=1e-1, rtol=1e-1), "mismatch vs f32 reference"

    # Multi-tile path: 2 batch tiles + ragged batch padding, exercises the grid loop.
    B2 = 40
    x2 = jax.random.normal(jax.random.fold_in(kx, 1), (B2, D_IN), jnp.float32)
    out2 = jax.block_until_ready(hand_sign_net_pallas(x2, prepared))
    assert out2.shape == (B2, NUM_CLASSES)
    assert jnp.allclose(out2, matched_reference(x2, prepared), atol=2e-2, rtol=2e-2), \
        "mismatch vs matched bf16 reference (multi-tile)"

    print("KERNEL_OK")
</pallas_src>

<mosaic_0001>
module attributes {stable_mosaic.version = 11 : i64} {
  func.func @handsign_kernel(%arg0: i32, %arg1: memref<16x63xf32, #tpu.memory_space<vmem>>, %arg2: memref<63x128xbf16, #tpu.memory_space<vmem>>, %arg3: memref<1x128xf32, #tpu.memory_space<vmem>>, %arg4: memref<128x256xbf16, #tpu.memory_space<vmem>>, %arg5: memref<1x256xf32, #tpu.memory_space<vmem>>, %arg6: memref<256x128xbf16, #tpu.memory_space<vmem>>, %arg7: memref<1x128xf32, #tpu.memory_space<vmem>>, %arg8: memref<128x128xbf16, #tpu.memory_space<vmem>>, %arg9: memref<1x128xf32, #tpu.memory_space<vmem>>, %arg10: memref<16x128xbf16, #tpu.memory_space<vmem>>) attributes {dimension_semantics = [#tpu.dimension_semantics<parallel>], iteration_bounds = array<i64: 1>, scalar_prefetch = 0 : i64, scratch_operands = 0 : i64, tpu.core_type = #tpu.core_type<tc>, window_params = [{transform_indices = @transform_0, window_bounds = array<i64: 16, 63>}, {pipeline_mode = #tpu.pipeline_mode<synchronous>, transform_indices = @transform_1, window_bounds = array<i64: 63, 128>}, {pipeline_mode = #tpu.pipeline_mode<synchronous>, transform_indices = @transform_2, window_bounds = array<i64: 1, 128>}, {pipeline_mode = #tpu.pipeline_mode<synchronous>, transform_indices = @transform_3, window_bounds = array<i64: 128, 256>}, {pipeline_mode = #tpu.pipeline_mode<synchronous>, transform_indices = @transform_4, window_bounds = array<i64: 1, 256>}, {pipeline_mode = #tpu.pipeline_mode<synchronous>, transform_indices = @transform_5, window_bounds = array<i64: 256, 128>}, {pipeline_mode = #tpu.pipeline_mode<synchronous>, transform_indices = @transform_6, window_bounds = array<i64: 1, 128>}, {pipeline_mode = #tpu.pipeline_mode<synchronous>, transform_indices = @transform_7, window_bounds = array<i64: 128, 128>}, {pipeline_mode = #tpu.pipeline_mode<synchronous>, transform_indices = @transform_8, window_bounds = array<i64: 1, 128>}, {transform_indices = @transform_9, window_bounds = array<i64: 16, 128>}]} {
    %c0 = arith.constant 0 : index
    %c0_0 = arith.constant 0 : index
    %0 = vector.load %arg1[%c0, %c0_0] : memref<16x63xf32, #tpu.memory_space<vmem>>, vector<16x63xf32>
    %1 = arith.truncf %0 : vector<16x63xf32> to vector<16x63xbf16>
    %c0_1 = arith.constant 0 : index
    %c0_2 = arith.constant 0 : index
    %2 = vector.load %arg2[%c0_1, %c0_2] : memref<63x128xbf16, #tpu.memory_space<vmem>>, vector<63x128xbf16>
    %cst = arith.constant dense<0.000000e+00> : vector<16x128xf32>
    %3 = tpu.matmul %1, %2, %cst {dimension_numbers = #tpu.dot_dimension_numbers<[1], [0], [0], [1], [0, 0, 1, 1], [], []>} : vector<16x63xbf16>, vector<63x128xbf16>, vector<16x128xf32> -> vector<16x128xf32>
    %c0_3 = arith.constant 0 : index
    %c0_4 = arith.constant 0 : index
    %4 = vector.load %arg3[%c0_3, %c0_4] : memref<1x128xf32, #tpu.memory_space<vmem>>, vector<1x128xf32>
    %5 = vector.broadcast %4 : vector<1x128xf32> to vector<16x128xf32>
    %6 = arith.addf %3, %5 : vector<16x128xf32>
    %cst_5 = arith.constant 0.000000e+00 : f32
    %7 = vector.broadcast %cst_5 : f32 to vector<16x128xf32>
    %8 = arith.maximumf %6, %7 : vector<16x128xf32>
    %9 = arith.truncf %8 : vector<16x128xf32> to vector<16x128xbf16>
    %c0_6 = arith.constant 0 : index
    %c0_7 = arith.constant 0 : index
    %10 = vector.load %arg4[%c0_6, %c0_7] : memref<128x256xbf16, #tpu.memory_space<vmem>>, vector<128x256xbf16>
    %cst_8 = arith.constant dense<0.000000e+00> : vector<16x256xf32>
    %11 = tpu.matmul %9, %10, %cst_8 {dimension_numbers = #tpu.dot_dimension_numbers<[1], [0], [0], [1], [0, 0, 1, 1], [], []>} : vector<16x128xbf16>, vector<128x256xbf16>, vector<16x256xf32> -> vector<16x256xf32>
    %c0_9 = arith.constant 0 : index
    %c0_10 = arith.constant 0 : index
    %12 = vector.load %arg5[%c0_9, %c0_10] : memref<1x256xf32, #tpu.memory_space<vmem>>, vector<1x256xf32>
    %13 = vector.broadcast %12 : vector<1x256xf32> to vector<16x256xf32>
    %14 = arith.addf %11, %13 : vector<16x256xf32>
    %cst_11 = arith.constant 0.000000e+00 : f32
    %15 = vector.broadcast %cst_11 : f32 to vector<16x256xf32>
    %16 = arith.maximumf %14, %15 : vector<16x256xf32>
    %17 = arith.truncf %16 : vector<16x256xf32> to vector<16x256xbf16>
    %c0_12 = arith.constant 0 : index
    %c0_13 = arith.constant 0 : index
    %18 = vector.load %arg6[%c0_12, %c0_13] : memref<256x128xbf16, #tpu.memory_space<vmem>>, vector<256x128xbf16>
    %cst_14 = arith.constant dense<0.000000e+00> : vector<16x128xf32>
    %19 = tpu.matmul %17, %18, %cst_14 {dimension_numbers = #tpu.dot_dimension_numbers<[1], [0], [0], [1], [0, 0, 1, 1], [], []>} : vector<16x256xbf16>, vector<256x128xbf16>, vector<16x128xf32> -> vector<16x128xf32>
    %c0_15 = arith.constant 0 : index
    %c0_16 = arith.constant 0 : index
    %20 = vector.load %arg7[%c0_15, %c0_16] : memref<1x128xf32, #tpu.memory_space<vmem>>, vector<1x128xf32>
    %21 = vector.broadcast %20 : vector<1x128xf32> to vector<16x128xf32>
    %22 = arith.addf %19, %21 : vector<16x128xf32>
    %cst_17 = arith.constant 0.000000e+00 : f32
    %23 = vector.broadcast %cst_17 : f32 to vector<16x128xf32>
    %24 = arith.maximumf %22, %23 : vector<16x128xf32>
    %25 = arith.truncf %24 : vector<16x128xf32> to vector<16x128xbf16>
    %c0_18 = arith.constant 0 : index
    %c0_19 = arith.constant 0 : index
    %26 = vector.load %arg8[%c0_18, %c0_19] : memref<128x128xbf16, #tpu.memory_space<vmem>>, vector<128x128xbf16>
    %cst_20 = arith.constant dense<0.000000e+00> : vector<16x128xf32>
    %27 = tpu.matmul %25, %26, %cst_20 {dimension_numbers = #tpu.dot_dimension_numbers<[1], [0], [0], [1], [0, 0, 1, 1], [], []>} : vector<16x128xbf16>, vector<128x128xbf16>, vector<16x128xf32> -> vector<16x128xf32>
    %c0_21 = arith.constant 0 : index
    %c0_22 = arith.constant 0 : index
    %28 = vector.load %arg9[%c0_21, %c0_22] : memref<1x128xf32, #tpu.memory_space<vmem>>, vector<1x128xf32>
    %29 = vector.broadcast %28 : vector<1x128xf32> to vector<16x128xf32>
    %30 = arith.addf %27, %29 : vector<16x128xf32>
    %31 = arith.truncf %30 : vector<16x128xf32> to vector<16x128xbf16>
    %c0_23 = arith.constant 0 : index
    %c0_24 = arith.constant 0 : index
    %32 = vector.load %arg10[%c0_23, %c0_24] : memref<16x128xbf16, #tpu.memory_space<vmem>>, vector<16x128xbf16>
    tpu.vector_store %arg10[%c0_23, %c0_24], %31 {strides = array<i32>} : memref<16x128xbf16, #tpu.memory_space<vmem>>, vector<16x128xbf16>,
    return
  }
  func.func @transform_0(%arg0: i32) -> (i32, i32) {
    %c0_i32 = arith.constant 0 : i32
    %c0_i32_0 = arith.constant 0 : i32
    return %arg0, %c0_i32 : i32, i32
  }
  func.func @transform_1(%arg0: i32) -> (i32, i32) {
    %c0_i32 = arith.constant 0 : i32
    %c0_i32_0 = arith.constant 0 : i32
    %c0_i32_1 = arith.constant 0 : i32
    return %c0_i32, %c0_i32_0 : i32, i32
  }
  func.func @transform_2(%arg0: i32) -> (i32, i32) {
    %c0_i32 = arith.constant 0 : i32
    %c0_i32_0 = arith.constant 0 : i32
    %c0_i32_1 = arith.constant 0 : i32
    return %c0_i32, %c0_i32_0 : i32, i32
  }
  func.func @transform_3(%arg0: i32) -> (i32, i32) {
    %c0_i32 = arith.constant 0 : i32
    %c0_i32_0 = arith.constant 0 : i32
    %c0_i32_1 = arith.constant 0 : i32
    return %c0_i32, %c0_i32_0 : i32, i32
  }
  func.func @transform_4(%arg0: i32) -> (i32, i32) {
    %c0_i32 = arith.constant 0 : i32
    %c0_i32_0 = arith.constant 0 : i32
    %c0_i32_1 = arith.constant 0 : i32
    return %c0_i32, %c0_i32_0 : i32, i32
  }
  func.func @transform_5(%arg0: i32) -> (i32, i32) {
    %c0_i32 = arith.constant 0 : i32
    %c0_i32_0 = arith.constant 0 : i32
    %c0_i32_1 = arith.constant 0 : i32
    return %c0_i32, %c0_i32_0 : i32, i32
  }
  func.func @transform_6(%arg0: i32) -> (i32, i32) {
    %c0_i32 = arith.constant 0 : i32
    %c0_i32_0 = arith.constant 0 : i32
    %c0_i32_1 = arith.constant 0 : i32
    return %c0_i32, %c0_i32_0 : i32, i32
  }
  func.func @transform_7(%arg0: i32) -> (i32, i32) {
    %c0_i32 = arith.constant 0 : i32
    %c0_i32_0 = arith.constant 0 : i32
    %c0_i32_1 = arith.constant 0 : i32
    return %c0_i32, %c0_i32_0 : i32, i32
  }
  func.func @transform_8(%arg0: i32) -> (i32, i32) {
    %c0_i32 = arith.constant 0 : i32
    %c0_i32_0 = arith.constant 0 : i32
    %c0_i32_1 = arith.constant 0 : i32
    return %c0_i32, %c0_i32_0 : i32, i32
  }
  func.func @transform_9(%arg0: i32) -> (i32, i32) {
    %c0_i32 = arith.constant 0 : i32
    %c0_i32_0 = arith.constant 0 : i32
    return %arg0, %c0_i32 : i32, i32
  }
}

</mosaic_0001>

<llo_original>
// kernel: tpu_custom_call.1
$region0: #{tpu_custom_call.1}
  #allocation0 [shape = 'u32[]', space=smem, size = 0x4, offset = 0x4, fixed_abs, tag = 'smem constant byte address 0x4 - core index']
  #allocation1 [shape = 'u32[72,128]{1,0:T(1,128)}', space=vmem, size = 0x9000, scoped, tag = 'internal scratch']
  %s0 = inlined_call_operand.hbm [shape: f32[16,63], index: 0, kind: input, shape index: {}]
  %s1 = inlined_call_operand.hbm [shape: bf16[63,128], index: 1, kind: input, shape index: {}]
  %s2 = inlined_call_operand.vmem [shape: f32[1,128], index: 2, kind: input, shape index: {}]
  %s3 = inlined_call_operand.hbm [shape: bf16[128,256], index: 3, kind: input, shape index: {}]
  %s4 = inlined_call_operand.vmem [shape: f32[1,256], index: 4, kind: input, shape index: {}]
  %s5 = inlined_call_operand.hbm [shape: bf16[256,128], index: 5, kind: input, shape index: {}]
  %s6 = inlined_call_operand.vmem [shape: f32[1,128], index: 6, kind: input, shape index: {}]
  %s7 = inlined_call_operand.hbm [shape: bf16[128,128], index: 7, kind: input, shape index: {}]
  %s8 = inlined_call_operand.vmem [shape: f32[1,128], index: 8, kind: input, shape index: {}]
  %s9 = inlined_call_operand.hbm [shape: bf16[16,128], index: 9, kind: output, shape index: {}]
  %s10 = sld [smem:[#allocation0]]
  $region66: #{tpu_custom_call.1} parent=0
    _
  %s12 = ssub.s32 1, %s10
  %s13 = scalar_select 0, %s12, %s10
  $region1: #{tpu_custom_call.1} parent=0
    #allocation2 [shape = 'u8[8192]{0}', space=vmem, size = 0x2000, scoped, tag = 'input window, operand 0, single buffered']
    #allocation3 [shape = 's32[1]{0}', space=sflag, size = 0x4, scoped, tag = 'scoped memory for tpu_custom_call.1']
    #allocation4 [shape = 's32[1]{0}', space=sflag, size = 0x4, scoped, tag = 'scoped memory for tpu_custom_call.1']
    #allocation5 [shape = 'u8[16384]{0}', space=vmem, size = 0x4000, scoped, tag = 'input window, operand 1, single buffered']
    #allocation6 [shape = 's32[1]{0}', space=sflag, size = 0x4, scoped, tag = 'scoped memory for tpu_custom_call.1']
    #allocation7 [shape = 'u8[65536]{0}', space=vmem, size = 0x10000, scoped, tag = 'input window, operand 3, single buffered']
    #allocation8 [shape = 'u8[65536]{0}', space=vmem, size = 0x10000, scoped, tag = 'input window, operand 5, single buffered']
    #allocation9 [shape = 's32[1]{0}', space=sflag, size = 0x4, scoped, tag = 'scoped memory for tpu_custom_call.1']
    #allocation10 [shape = 'u8[32768]{0}', space=vmem, size = 0x8000, scoped, tag = 'input window, operand 7, single buffered']
    #allocation11 [shape = 'u8[4096]{0}', space=vmem, size = 0x1000, scoped, tag = 'output window, operand 0, single buffered']
    %14 = vsyncpa [#allocation3], 0
    %15 = vsyncpa [#allocation6], 0
    %16 = vsyncpa [#allocation9], 0
    %17 = vsyncpa [#allocation4], 0
    // Predicated region
    $region2: #{tpu_custom_call.1} parent=1 // pred_check
      _
    $region3: #{tpu_custom_call.1} parent=1 // pred_check_branch
      %19 = sbr.rel (0) target = $region5
    $region4: #{tpu_custom_call.1} parent=1 // pred_region
      %21 = vsyncadd [#allocation3], 0
      %s22 = sshll.u32 %s0, 4
      %s23 = int_to_ptr.hbm [resolvable:$true] %s22
      %s24 = sshll.u32 [#allocation2], 4
      %s25 = int_to_ptr.vmem [resolvable:$true] %s24
      %30 = dma.hbm_to_vmem [thread:$0]  %s23, 256, %s25, [#allocation3], 128, 128, 8
    $region5: #{tpu_custom_call.1} parent=1 // pred_fallthru
      _
    // Predicated region
    $region6: #{tpu_custom_call.1} parent=1 // pred_check
      _
    $region7: #{tpu_custom_call.1} parent=1 // pred_check_branch
      %32 = sbr.rel (0) target = $region9
    $region8: #{tpu_custom_call.1} parent=1 // pred_region
      %34 = vsyncadd [#allocation6], 0
      %s35 = sshll.u32 %s1, 4
      %s36 = int_to_ptr.hbm [resolvable:$true] %s35
      %s37 = sshll.u32 [#allocation5], 4
      %s38 = int_to_ptr.vmem [resolvable:$true] %s37
      %43 = dma.hbm_to_vmem [thread:$0]  %s36, 512, %s38, [#allocation6], 64, 64, 4
    $region9: #{tpu_custom_call.1} parent=1 // pred_fallthru
      _
    // Predicated region
    $region10: #{tpu_custom_call.1} parent=1 // pred_check
      _
    $region11: #{tpu_custom_call.1} parent=1 // pred_check_branch
      %45 = sbr.rel (0) target = $region13
    $region12: #{tpu_custom_call.1} parent=1 // pred_region
      _
    $region13: #{tpu_custom_call.1} parent=1 // pred_fallthru
      _
    // Predicated region
    $region14: #{tpu_custom_call.1} parent=1 // pred_check
      _
    $region15: #{tpu_custom_call.1} parent=1 // pred_check_branch
      %47 = sbr.rel (0) target = $region17
    $region16: #{tpu_custom_call.1} parent=1 // pred_region
      %49 = vsyncadd [#allocation6], 0
      %s50 = sshll.u32 %s3, 4
      %s51 = int_to_ptr.hbm [resolvable:$true] %s50
      %s52 = sshll.u32 [#allocation7], 4
      %s53 = int_to_ptr.vmem [resolvable:$true] %s52
      %58 = dma.hbm_to_vmem [thread:$0]  %s51, 2048, %s53, [#allocation6], 128, 128, 8
    $region17: #{tpu_custom_call.1} parent=1 // pred_fallthru
      _
    // Predicated region
    $region18: #{tpu_custom_call.1} parent=1 // pred_check
      _
    $region19: #{tpu_custom_call.1} parent=1 // pred_check_branch
      %60 = sbr.rel (0) target = $region21
    $region20: #{tpu_custom_call.1} parent=1 // pred_region
      _
    $region21: #{tpu_custom_call.1} parent=1 // pred_fallthru
      _
    // Predicated region
    $region22: #{tpu_custom_call.1} parent=1 // pred_check
      _
    $region23: #{tpu_custom_call.1} parent=1 // pred_check_branch
      %62 = sbr.rel (0) target = $region25
    $region24: #{tpu_custom_call.1} parent=1 // pred_region
      %64 = vsyncadd [#allocation9], 0
      %s65 = sshll.u32 %s5, 4
      %s66 = int_to_ptr.hbm [resolvable:$true] %s65
      %s67 = sshll.u32 [#allocation8], 4
      %s68 = int_to_ptr.vmem [resolvable:$true] %s67
      %73 = dma.hbm_to_vmem [thread:$0]  %s66, 2048, %s68, [#allocation9], 64, 64, 4
    $region25: #{tpu_custom_call.1} parent=1 // pred_fallthru
      _
    // Predicated region
    $region26: #{tpu_custom_call.1} parent=1 // pred_check
      _
    $region27: #{tpu_custom_call.1} parent=1 // pred_check_branch
      %75 = sbr.rel (0) target = $region29
    $region28: #{tpu_custom_call.1} parent=1 // pred_region
      _
    $region29: #{tpu_custom_call.1} parent=1 // pred_fallthru
      _
    // Predicated region
    $region30: #{tpu_custom_call.1} parent=1 // pred_check
      _
    $region31: #{tpu_custom_call.1} parent=1 // pred_check_branch
      %77 = sbr.rel (0) target = $region33
    $region32: #{tpu_custom_call.1} parent=1 // pred_region
      %79 = vsyncadd [#allocation9], 0
      %s80 = sshll.u32 %s7, 4
      %s81 = int_to_ptr.hbm [resolvable:$true] %s80
      %s82 = sshll.u32 [#allocation10], 4
      %s83 = int_to_ptr.vmem [resolvable:$true] %s82
      %88 = dma.hbm_to_vmem [thread:$0]  %s81, 1024, %s83, [#allocation9], 64, 64, 4
    $region33: #{tpu_custom_call.1} parent=1 // pred_fallthru
      _
    // Predicated region
    $region34: #{tpu_custom_call.1} parent=1 // pred_check
      _
    $region35: #{tpu_custom_call.1} parent=1 // pred_check_branch
      %90 = sbr.rel (0) target = $region37
    $region36: #{tpu_custom_call.1} parent=1 // pred_region
      _
    $region37: #{tpu_custom_call.1} parent=1 // pred_fallthru
      _
    // Predicated region
    $region38: #{tpu_custom_call.1} parent=1 // pred_check
      _
    $region39: #{tpu_custom_call.1} parent=1 // pred_check_branch
      %92 = sbr.rel (0) target = $region41
    $region40: #{tpu_custom_call.1} parent=1 // pred_region
      %94 = dma.done [#allocation3], 256
    $region41: #{tpu_custom_call.1} parent=1 // pred_fallthru
      _
    // Predicated region
    $region42: #{tpu_custom_call.1} parent=1 // pred_check
      _
    $region43: #{tpu_custom_call.1} parent=1 // pred_check_branch
      %96 = sbr.rel (0) target = $region45
    $region44: #{tpu_custom_call.1} parent=1 // pred_region
      %98 = dma.done [#allocation6], 512
    $region45: #{tpu_custom_call.1} parent=1 // pred_fallthru
      _
    // Predicated region
    $region46: #{tpu_custom_call.1} parent=1 // pred_check
      _
    $region47: #{tpu_custom_call.1} parent=1 // pred_check_branch
      %100 = sbr.rel (0) target = $region49
    $region48: #{tpu_custom_call.1} parent=1 // pred_region
      %102 = dma.done [#allocation6], 2048
    $region49: #{tpu_custom_call.1} parent=1 // pred_fallthru
      _
    // Predicated region
    $region50: #{tpu_custom_call.1} parent=1 // pred_check
      _
    $region51: #{tpu_custom_call.1} parent=1 // pred_check_branch
      %104 = sbr.rel (0) target = $region53
    $region52: #{tpu_custom_call.1} parent=1 // pred_region
      %106 = dma.done [#allocation9], 2048
    $region53: #{tpu_custom_call.1} parent=1 // pred_fallthru
      _
    // Predicated region
    $region54: #{tpu_custom_call.1} parent=1 // pred_check
      _
    $region55: #{tpu_custom_call.1} parent=1 // pred_check_branch
      %108 = sbr.rel (0) target = $region57
    $region56: #{tpu_custom_call.1} parent=1 // pred_region
      %110 = dma.done [#allocation9], 1024
    $region57: #{tpu_custom_call.1} parent=1 // pred_fallthru
      _
    %v112 = vld [vmem:[#allocation2] sm:$0xff]
    %v113 = vld [vmem:[#allocation2 + $0x8] sm:$0xff]
    %v114 = vpack.c.bf16 %v113, %v112
    %v115 = vld [vmem:[#allocation5] sm:$0xf]
    %v116 = vld [vmem:[#allocation5 + $0x4] sm:$0xf]
    %v117 = vld [vmem:[#allocation5 + $0x8] sm:$0xf]
    %v118 = vld [vmem:[#allocation5 + $0xc] sm:$0xf]
    %v119 = vld [vmem:[#allocation5 + $0x10] sm:$0xf]
    %v120 = vld [vmem:[#allocation5 + $0x14] sm:$0xf]
    %v121 = vld [vmem:[#allocation5 + $0x18] sm:$0xf]
    %v122 = vld [vmem:[#allocation5 + $0x1c] sm:$0xf]
    %v123 = vld [vmem:[%s2] sm:$0x1]
    %v125 = vperm.slane %v123, 0
    %v135 = vunpack.c.l.b16 %v115
    %v136 = vunpack.c.l.b16 %v116
    %v137 = vunpack.c.l.b16 %v117
    %v138 = vunpack.c.l.b16 %v118
    %v139 = vunpack.c.l.b16 %v119
    %v140 = vunpack.c.l.b16 %v120
    %v141 = vunpack.c.l.b16 %v121
    %v142 = vunpack.c.l.b16 %v122
    %v143 = vpack.c.b16 %v136, %v135
    %v144 = vpack.c.b16 %v138, %v137
    %v145 = vpack.c.b16 %v140, %v139
    %v146 = vpack.c.b16 %v142, %v141
    %vm150 = vcmask 515072
    %v152 = vsel %vm150, %v114, 0
    %vm154 = vcmask 1046528
    %vm155 = vcmask 1047552
    %v156 = vsel %vm154, 4294967295, 65535
    %v157 = vsel %vm155, %v156, 0
    %v159 = vand.u32 %v146, %v157
    %161 = vmatpush.bf16.msra.mxu0 0
    %162 = vmatpush.bf16.msra.mxu0 0
    %163 = vmatpush.bf16.msra.mxu0 0
    %164 = vmatpush.bf16.msra.mxu0 0
    %165 = vmatpush.bf16.msra.mxu0 %v159
    %166 = vmatpush.bf16.msra.mxu0 %v145
    %167 = vmatpush.bf16.msra.mxu0 %v144
    %168 = vmatpush.bf16.msra.mxu0 %v143
    %169 = vmatmul.bf16.gmra.mxu0 %v152
    %v170 = vpop.f32.mrf.mxu0
    %v171 = vadd.f32 %v125, %v170
    %v172 = vpop.f32.mrf.mxu0
    %v173 = vadd.f32 %v125, %v172
    %174 = vdwg.mxu0
    %v175 = vmax.f32 %v171, 0.0
    %v176 = vmax.f32 %v173, 0.0
    %v177 = vpack.c.bf16 %v176, %v175
    %v178 = vld [vmem:[#allocation7] sm:$0xff]
    %v179 = vld [vmem:[#allocation7 + $0x8] sm:$0xff]
    %v180 = vld [vmem:[#allocation7 + $0x10] sm:$0xff]
    %v181 = vld [vmem:[#allocation7 + $0x18] sm:$0xff]
    %v182 = vld [vmem:[#allocation7 + $0x20] sm:$0xff]
    %v183 = vld [vmem:[#allocation7 + $0x28] sm:$0xff]
    %v184 = vld [vmem:[#allocation7 + $0x30] sm:$0xff]
    %v185 = vld [vmem:[#allocation7 + $0x38] sm:$0xff]
    %v186 = vld [vmem:[#allocation7 + $0x40] sm:$0xff]
    %v187 = vld [vmem:[#allocation7 + $0x48] sm:$0xff]
    %v188 = vld [vmem:[#allocation7 + $0x50] sm:$0xff]
    %v189 = vld [vmem:[#allocation7 + $0x58] sm:$0xff]
    %v190 = vld [vmem:[#allocation7 + $0x60] sm:$0xff]
    %v191 = vld [vmem:[#allocation7 + $0x68] sm:$0xff]
    %v192 = vld [vmem:[#allocation7 + $0x70] sm:$0xff]
    %v193 = vld [vmem:[#allocation7 + $0x78] sm:$0xff]
    %v194 = vld [vmem:[%s4] sm:$0x3]
    %v196 = vperm.slane %v194, 0
    %v197 = vperm.slane %v194, 1
    %v216 = vunpack.c.l.b16 %v178
    %v217 = vunpack.c.h.b16 %v178
    %v218 = vunpack.c.l.b16 %v179
    %v219 = vunpack.c.h.b16 %v179
    %v220 = vunpack.c.l.b16 %v180
    %v221 = vunpack.c.h.b16 %v180
    %v222 = vunpack.c.l.b16 %v181
    %v223 = vunpack.c.h.b16 %v181
    %v224 = vunpack.c.l.b16 %v182
    %v225 = vunpack.c.h.b16 %v182
    %v226 = vunpack.c.l.b16 %v183
    %v227 = vunpack.c.h.b16 %v183
    %v228 = vunpack.c.l.b16 %v184
    %v229 = vunpack.c.h.b16 %v184
    %v230 = vunpack.c.l.b16 %v185
    %v231 = vunpack.c.h.b16 %v185
    %v232 = vunpack.c.l.b16 %v186
    %v233 = vunpack.c.h.b16 %v186
    %v234 = vunpack.c.l.b16 %v187
    %v235 = vunpack.c.h.b16 %v187
    %v236 = vunpack.c.l.b16 %v188
    %v237 = vunpack.c.h.b16 %v188
    %v238 = vunpack.c.l.b16 %v189
    %v239 = vunpack.c.h.b16 %v189
    %v240 = vunpack.c.l.b16 %v190
    %v241 = vunpack.c.h.b16 %v190
    %v242 = vunpack.c.l.b16 %v191
    %v243 = vunpack.c.h.b16 %v191
    %v244 = vunpack.c.l.b16 %v192
    %v245 = vunpack.c.h.b16 %v192
    %v246 = vunpack.c.l.b16 %v193
    %v247 = vunpack.c.h.b16 %v193
    %v248 = vpack.c.b16 %v218, %v216
    %v249 = vpack.c.b16 %v219, %v217
    %v250 = vpack.c.b16 %v222, %v220
    %v251 = vpack.c.b16 %v223, %v221
    %v252 = vpack.c.b16 %v226, %v224
    %v253 = vpack.c.b16 %v227, %v225
    %v254 = vpack.c.b16 %v230, %v228
    %v255 = vpack.c.b16 %v231, %v229
    %v256 = vpack.c.b16 %v234, %v232
    %v257 = vpack.c.b16 %v235, %v233
    %v258 = vpack.c.b16 %v238, %v236
    %v259 = vpack.c.b16 %v239, %v237
    %v260 = vpack.c.b16 %v242, %v240
    %v261 = vpack.c.b16 %v243, %v241
    %v262 = vpack.c.b16 %v246, %v244
    %v263 = vpack.c.b16 %v247, %v245
    %280 = vmatpush.bf16.msra.mxu0 %v262
    %281 = vmatpush.bf16.msra.mxu0 %v260
    %282 = vmatpush.bf16.msra.mxu0 %v258
    %283 = vmatpush.bf16.msra.mxu0 %v256
    %284 = vmatpush.bf16.msra.mxu0 %v254
    %285 = vmatpush.bf16.msra.mxu0 %v252
    %286 = vmatpush.bf16.msra.mxu0 %v250
    %287 = vmatpush.bf16.msra.mxu0 %v248
    %288 = vmatmul.bf16.gmra.mxu0 %v177
    %v289 = vpop.f32.mrf.mxu0
    %v290 = vadd.f32 %v196, %v289
    %v291 = vpop.f32.mrf.mxu0
    %v292 = vadd.f32 %v196, %v291
    %293 = vdwg.mxu0
    %294 = vmatpush.bf16.msra.mxu0 %v263
    %295 = vmatpush.bf16.msra.mxu0 %v261
    %296 = vmatpush.bf16.msra.mxu0 %v259
    %297 = vmatpush.bf16.msra.mxu0 %v257
    %298 = vmatpush.bf16.msra.mxu0 %v255
    %299 = vmatpush.bf16.msra.mxu0 %v253
    %300 = vmatpush.bf16.msra.mxu0 %v251
    %301 = vmatpush.bf16.msra.mxu0 %v249
    %302 = vmatmul.bf16.gmra.mxu0 %v177
    %v303 = vpop.f32.mrf.mxu0
    %v304 = vadd.f32 %v197, %v303
    %v305 = vpop.f32.mrf.mxu0
    %v306 = vadd.f32 %v197, %v305
    %307 = vdwg.mxu0
    %v308 = vmax.f32 %v290, 0.0
    %v309 = vmax.f32 %v304, 0.0
    %v310 = vmax.f32 %v292, 0.0
    %v311 = vmax.f32 %v306, 0.0
    %v312 = vpack.c.bf16 %v310, %v308
    %v313 = vpack.c.bf16 %v311, %v309
    %v314 = vld [vmem:[#allocation8] sm:$0xf]
    %v315 = vld [vmem:[#allocation8 + $0x4] sm:$0xf]
    %v316 = vld [vmem:[#allocation8 + $0x8] sm:$0xf]
    %v317 = vld [vmem:[#allocation8 + $0xc] sm:$0xf]
    %v318 = vld [vmem:[#allocation8 + $0x10] sm:$0xf]
    %v319 = vld [vmem:[#allocation8 + $0x14] sm:$0xf]
    %v320 = vld [vmem:[#allocation8 + $0x18] sm:$0xf]
    %v321 = vld [vmem:[#allocation8 + $0x1c] sm:$0xf]
    %v322 = vld [vmem:[#allocation8 + $0x20] sm:$0xf]
    %v323 = vld [vmem:[#allocation8 + $0x24] sm:$0xf]
    %v324 = vld [vmem:[#allocation8 + $0x28] sm:$0xf]
    %v325 = vld [vmem:[#allocation8 + $0x2c] sm:$0xf]
    %v326 = vld [vmem:[#allocation8 + $0x30] sm:$0xf]
    %v327 = vld [vmem:[#allocation8 + $0x34] sm:$0xf]
    %v328 = vld [vmem:[#allocation8 + $0x38] sm:$0xf]
    %v329 = vld [vmem:[#allocation8 + $0x3c] sm:$0xf]
    %v330 = vld [vmem:[#allocation8 + $0x40] sm:$0xf]
    %v331 = vld [vmem:[#allocation8 + $0x44] sm:$0xf]
    %v332 = vld [vmem:[#allocation8 + $0x48] sm:$0xf]
    %v333 = vld [vmem:[#allocation8 + $0x4c] sm:$0xf]
    %v334 = vld [vmem:[#allocation8 + $0x50] sm:$0xf]
    %v335 = vld [vmem:[#allocation8 + $0x54] sm:$0xf]
    %v336 = vld [vmem:[#allocation8 + $0x58] sm:$0xf]
    %v337 = vld [vmem:[#allocation8 + $0x5c] sm:$0xf]
    %v338 = vld [vmem:[#allocation8 + $0x60] sm:$0xf]
    %v339 = vld [vmem:[#allocation8 + $0x64] sm:$0xf]
    %v340 = vld [vmem:[#allocation8 + $0x68] sm:$0xf]
    %v341 = vld [vmem:[#allocation8 + $0x6c] sm:$0xf]
    %v342 = vld [vmem:[#allocation8 + $0x70] sm:$0xf]
    %v343 = vld [vmem:[#allocation8 + $0x74] sm:$0xf]
    %v344 = vld [vmem:[#allocation8 + $0x78] sm:$0xf]
    %v345 = vld [vmem:[#allocation8 + $0x7c] sm:$0xf]
    %v346 = vld [vmem:[%s6] sm:$0x1]
    %v348 = vperm.slane %v346, 0
    %v382 = vunpack.c.l.b16 %v314
    %v383 = vunpack.c.l.b16 %v315
    %v384 = vunpack.c.l.b16 %v316
    %v385 = vunpack.c.l.b16 %v317
    %v386 = vunpack.c.l.b16 %v318
    %v387 = vunpack.c.l.b16 %v319
    %v388 = vunpack.c.l.b16 %v320
    %v389 = vunpack.c.l.b16 %v321
    %v390 = vunpack.c.l.b16 %v322
    %v391 = vunpack.c.l.b16 %v323
    %v392 = vunpack.c.l.b16 %v324
    %v393 = vunpack.c.l.b16 %v325
    %v394 = vunpack.c.l.b16 %v326
    %v395 = vunpack.c.l.b16 %v327
    %v396 = vunpack.c.l.b16 %v328
    %v397 = vunpack.c.l.b16 %v329
    %v398 = vunpack.c.l.b16 %v330
    %v399 = vunpack.c.l.b16 %v331
    %v400 = vunpack.c.l.b16 %v332
    %v401 = vunpack.c.l.b16 %v333
    %v402 = vunpack.c.l.b16 %v334
    %v403 = vunpack.c.l.b16 %v335
    %v404 = vunpack.c.l.b16 %v336
    %v405 = vunpack.c.l.b16 %v337
    %v406 = vunpack.c.l.b16 %v338
    %v407 = vunpack.c.l.b16 %v339
    %v408 = vunpack.c.l.b16 %v340
    %v409 = vunpack.c.l.b16 %v341
    %v410 = vunpack.c.l.b16 %v342
    %v411 = vunpack.c.l.b16 %v343
    %v412 = vunpack.c.l.b16 %v344
    %v413 = vunpack.c.l.b16 %v345
    %v414 = vpack.c.b16 %v383, %v382
    %v415 = vpack.c.b16 %v385, %v384
    %v416 = vpack.c.b16 %v387, %v386
    %v417 = vpack.c.b16 %v389, %v388
    %v418 = vpack.c.b16 %v391, %v390
    %v419 = vpack.c.b16 %v393, %v392
    %v420 = vpack.c.b16 %v395, %v394
    %v421 = vpack.c.b16 %v397, %v396
    %v422 = vpack.c.b16 %v399, %v398
    %v423 = vpack.c.b16 %v401, %v400
    %v424 = vpack.c.b16 %v403, %v402
    %v425 = vpack.c.b16 %v405, %v404
    %v426 = vpack.c.b16 %v407, %v406
    %v427 = vpack.c.b16 %v409, %v408
    %v428 = vpack.c.b16 %v411, %v410
    %v429 = vpack.c.b16 %v413, %v412
    %446 = vmatpush.bf16.msra.mxu0 %v421
    %447 = vmatpush.bf16.msra.mxu0 %v420
    %448 = vmatpush.bf16.msra.mxu0 %v419
    %449 = vmatpush.bf16.msra.mxu0 %v418
    %450 = vmatpush.bf16.msra.mxu0 %v417
    %451 = vmatpush.bf16.msra.mxu0 %v416
    %452 = vmatpush.bf16.msra.mxu0 %v415
    %453 = vmatpush.bf16.msra.mxu0 %v414
    %454 = vmatmul.bf16.gmra.mxu0 %v312
    %v455 = vpop.f32.mrf.mxu0
    %v456 = vadd.f32 %v348, %v455
    %v457 = vpop.f32.mrf.mxu0
    %v458 = vadd.f32 %v348, %v457
    %459 = vdwg.mxu0
    %460 = vmatpush.bf16.msra.mxu0 %v429
    %461 = vmatpush.bf16.msra.mxu0 %v428
    %462 = vmatpush.bf16.msra.mxu0 %v427
    %463 = vmatpush.bf16.msra.mxu0 %v426
    %464 = vmatpush.bf16.msra.mxu0 %v425
    %465 = vmatpush.bf16.msra.mxu0 %v424
    %466 = vmatpush.bf16.msra.mxu0 %v423
    %467 = vmatpush.bf16.msra.mxu0 %v422
    %468 = vmatmul.bf16.gmra.mxu0 %v313
    %v469 = vpop.f32.mrf.mxu0
    %v470 = vadd.f32 %v456, %v469
    %v471 = vpop.f32.mrf.mxu0
    %v472 = vadd.f32 %v458, %v471
    %473 = vdwg.mxu0
    %v474 = vmax.f32 %v470, 0.0
    %v475 = vmax.f32 %v472, 0.0
    %v476 = vpack.c.bf16 %v475, %v474
    %v477 = vld [vmem:[#allocation10] sm:$0xf]
    %v478 = vld [vmem:[#allocation10 + $0x4] sm:$0xf]
    %v479 = vld [vmem:[#allocation10 + $0x8] sm:$0xf]
    %v480 = vld [vmem:[#allocation10 + $0xc] sm:$0xf]
    %v481 = vld [vmem:[#allocation10 + $0x10] sm:$0xf]
    %v482 = vld [vmem:[#allocation10 + $0x14] sm:$0xf]
    %v483 = vld [vmem:[#allocation10 + $0x18] sm:$0xf]
    %v484 = vld [vmem:[#allocation10 + $0x1c] sm:$0xf]
    %v485 = vld [vmem:[#allocation10 + $0x20] sm:$0xf]
    %v486 = vld [vmem:[#allocation10 + $0x24] sm:$0xf]
    %v487 = vld [vmem:[#allocation10 + $0x28] sm:$0xf]
    %v488 = vld [vmem:[#allocation10 + $0x2c] sm:$0xf]
    %v489 = vld [vmem:[#allocation10 + $0x30] sm:$0xf]
    %v490 = vld [vmem:[#allocation10 + $0x34] sm:$0xf]
    %v491 = vld [vmem:[#allocation10 + $0x38] sm:$0xf]
    %v492 = vld [vmem:[#allocation10 + $0x3c] sm:$0xf]
    %v493 = vld [vmem:[%s8] sm:$0x1]
    %v495 = vperm.slane %v493, 0
    %v513 = vunpack.c.l.b16 %v477
    %v514 = vunpack.c.l.b16 %v478
    %v515 = vunpack.c.l.b16 %v479
    %v516 = vunpack.c.l.b16 %v480
    %v517 = vunpack.c.l.b16 %v481
    %v518 = vunpack.c.l.b16 %v482
    %v519 = vunpack.c.l.b16 %v483
    %v520 = vunpack.c.l.b16 %v484
    %v521 = vunpack.c.l.b16 %v485
    %v522 = vunpack.c.l.b16 %v486
    %v523 = vunpack.c.l.b16 %v487
    %v524 = vunpack.c.l.b16 %v488
    %v525 = vunpack.c.l.b16 %v489
    %v526 = vunpack.c.l.b16 %v490
    %v527 = vunpack.c.l.b16 %v491
    %v528 = vunpack.c.l.b16 %v492
    %v529 = vpack.c.b16 %v514, %v513
    %v530 = vpack.c.b16 %v516, %v515
    %v531 = vpack.c.b16 %v518, %v517
    %v532 = vpack.c.b16 %v520, %v519
    %v533 = vpack.c.b16 %v522, %v521
    %v534 = vpack.c.b16 %v524, %v523
    %v535 = vpack.c.b16 %v526, %v525
    %v536 = vpack.c.b16 %v528, %v527
    %545 = vmatpush.bf16.msra.mxu0 %v536
    %546 = vmatpush.bf16.msra.mxu0 %v535
    %547 = vmatpush.bf16.msra.mxu0 %v534
    %548 = vmatpush.bf16.msra.mxu0 %v533
    %549 = vmatpush.bf16.msra.mxu0 %v532
    %550 = vmatpush.bf16.msra.mxu0 %v531
    %551 = vmatpush.bf16.msra.mxu0 %v530
    %552 = vmatpush.bf16.msra.mxu0 %v529
    %553 = vmatmul.bf16.gmra.mxu0 %v476
    %v554 = vpop.f32.mrf.mxu0
    %v555 = vadd.f32 %v495, %v554
    %v556 = vpop.f32.mrf.mxu0
    %v557 = vadd.f32 %v495, %v556
    %558 = vdwg.mxu0
    %v559 = vpack.c.bf16 %v555, %v555
    %v560 = vpack.c.bf16 %v557, %v557
    %561 = vst [vmem:[#allocation11] sm:$0xf] %v559
    %562 = vst [vmem:[#allocation11 + $0x4] sm:$0xf] %v560
    // Predicated region
    $region58: #{tpu_custom_call.1} parent=1 // pred_check
      _
    $region59: #{tpu_custom_call.1} parent=1 // pred_check_branch
      %564 = sbr.rel (0) target = $region61
    $region60: #{tpu_custom_call.1} parent=1 // pred_region
      %566 = vsyncadd [#allocation4], 0
      %s567 = sshll.u32 [#allocation11], 4
      %s568 = int_to_ptr.vmem [resolvable:$true] %s567
      %s569 = sshll.u32 %s9, 4
      %s570 = int_to_ptr.hbm [resolvable:$true] %s569
      %575 = dma.vmem_to_hbm [thread:$0]  %s568, 128, %s570, [#allocation4], 64, 64, 4
    $region61: #{tpu_custom_call.1} parent=1 // pred_fallthru
      _
    // Predicated region
    $region62: #{tpu_custom_call.1} parent=1 // pred_check
      _
    $region63: #{tpu_custom_call.1} parent=1 // pred_check_branch
      %577 = sbr.rel (0) target = $region65
    $region64: #{tpu_custom_call.1} parent=1 // pred_region
      %579 = dma.done [#allocation4], 128
    $region65: #{tpu_custom_call.1} parent=1 // pred_fallthru
      _
    %580 = vsyncpa [#allocation3], 1
    %581 = vsyncpa [#allocation6], 1
    %582 = vsyncpa [#allocation9], 1
    %583 = vsyncpa [#allocation4], 1

</llo_original>
